<compile_context>
chip_gen: v6e
topology: v6e:2x2x1
jax: 0.10.0
libtpu: 0.0.40
codegen_flags: <defaults>
</compile_context>

<pallas_src>
import functools

import jax
import jax.numpy as jnp
from jax.experimental import pallas as pl
from jax.experimental.pallas import tpu as pltpu


def attention_kernel(enc_ref, hid_ref, par_ref, ctx_ref, alpha_ref, *,
                     context_via_mxu: bool, approx_recip: bool):
    """One batch-block of the attention module.

    enc_ref  : (bb, L, E)  encoder_output block (compute dtype, e.g. bf16)
    hid_ref  : (bb, H)     hidden block (compute dtype)
    par_ref  : (P, A)      packed params: rows [0:E]=We, [E:E+H]=Wd,
                           [E+H]=be+bd, [E+H+1]=Wa^T (remaining rows = padding)
    ctx_ref  : (bb, E)     f32 context output
    alpha_ref: (bb, L)     f32 attention weights (lane-dense)
    """
    bb, L, E = enc_ref.shape
    H = hid_ref.shape[1]

    x = enc_ref[...]                                               # (bb, L, E)

    # Static slices of the packed parameter block.
    w_e = par_ref[:E, :]                                           # (E, A)
    w_d = par_ref[E:E + H, :]                                      # (H, A)
    bias = par_ref[E + H:E + H + 1, :].astype(jnp.float32)         # (1, A) be+bd
    wa_r = par_ref[E + H + 1:E + H + 2, :].astype(jnp.float32)     # (1, A) Wa^T

    # encoder_attention: fold batch into the matmul M dimension -> MXU, f32 acc.
    if L % 8 == 0:                                                 # free relayout
        enc_att = jnp.dot(x.reshape(bb * L, E), w_e,
                          preferred_element_type=jnp.float32).reshape(bb, L, -1)
    else:                                                          # keep 3D
        enc_att = jnp.einsum('ble,ea->bla', x, w_e,
                             preferred_element_type=jnp.float32)

    # decoder_attention (+ folded be+bd bias) -> MXU, f32 accumulate.
    dec_att = jnp.dot(hid_ref[...], w_d,
                      preferred_element_type=jnp.float32) + bias   # (bb, A)

    # relu(enc + dec broadcast over L); elementwise section is f32 (v5e-safe).
    a = jnp.maximum(enc_att + dec_att[:, None, :], 0.0)            # (bb, L, A)

    # scores[b, l] = sum_A a[b, l, :] * Wa[:]   (lane-direction reduce).
    # The final Linear's scalar bias is a softmax shift -> dropped.
    scores = jnp.sum(a * wa_r[None, :, :], axis=-1)                # (bb, L)

    # softmax over L along the lane axis (f32).
    m = jnp.max(scores, axis=-1, keepdims=True)
    p = jnp.exp(scores - m)
    denom = jnp.sum(p, axis=-1, keepdims=True)
    alpha = p * pl.reciprocal(denom, approx=approx_recip)          # (bb, L)
    alpha_ref[...] = alpha                                         # lane-dense store

    # context = sum_L alpha * encoder_output.
    x_f32 = x.astype(jnp.float32)        # upcast before the VPU section (v5e)
    if context_via_mxu:
        # v7x: MRB makes tiny (1,L)@(L,E) matmuls cheap -> keep them on the MXU.
        ctx = jnp.einsum('bql,ble->bqe', alpha[:, None, :], x_f32,
                         preferred_element_type=jnp.float32).reshape(bb, E)
    else:
        # v5e/v6e: broadcast-multiply (VPU) + sublane reduce (XLU); avoids the
        # MXU round-trip / MRF pop of an M=1, K=L matmul.
        ctx = jnp.sum(alpha[:, :, None] * x_f32, axis=1)
    ctx_ref[...] = ctx


def _pick_batch_block(B, L, E, itemsize, target_block_bytes=2 << 20, min_steps=8):
    """Largest legal batch block that keeps the encoder block ~<=2 MiB and leaves
    enough grid steps for pipelining (>=8) / megacore (>=2 on v7x)."""
    legal = [bb for bb in range(8, B, 8) if B % bb == 0]     # proper splits only
    if not legal:
        return B                                             # e.g. B=2: collapse
    ok_bytes = lambda bb: bb * L * E * itemsize <= target_block_bytes
    for want_steps in (min_steps, 2):
        cands = [bb for bb in legal if B // bb >= want_steps and ok_bytes(bb)]
        if cands:
            return max(cands)
    cands = [bb for bb in legal if ok_bytes(bb)]
    return max(cands) if cands else min(legal)


def _build_call(kernel_fn, *, B, bb, L, E, H, P, A, vmem_limit,
                single_buffer_params):
    # Constant-index_map params never change across grid steps -> single-buffer
    # them (halves their VMEM footprint; matters most on v7x's 64 MiB VMEM).
    par_kwargs = dict(pipeline_mode=pl.Buffered(1)) if single_buffer_params else {}
    full = lambda g: (0, 0)
    return pl.pallas_call(
        kernel_fn,
        out_shape=(
            jax.ShapeDtypeStruct((B, E), jnp.float32),
            jax.ShapeDtypeStruct((B, L), jnp.float32),
        ),
        grid_spec=pltpu.PrefetchScalarGridSpec(
            num_scalar_prefetch=0,
            grid=(B // bb,),
            in_specs=[
                pl.BlockSpec((bb, L, E), lambda g: (g, 0, 0)),   # encoder block
                pl.BlockSpec((bb, H), lambda g: (g, 0)),         # hidden block
                pl.BlockSpec((P, A), full, **par_kwargs),        # packed params
            ],
            out_specs=[
                pl.BlockSpec((bb, E), lambda g: (g, 0)),         # context
                pl.BlockSpec((bb, L), lambda g: (g, 0)),         # alpha (lane-dense)
            ],
        ),
        compiler_params=pltpu.CompilerParams(
            dimension_semantics=("parallel",),
            vmem_limit_bytes=vmem_limit),
    )


def attention_module(encoder_output, hidden, params, *,
                     compute_dtype=jnp.bfloat16,
                     batch_block=None,
                     context_via_mxu=False,
                     approx_recip=False):
    """encoder_output: [B, L, E], hidden: [B, H],
       params = (We, be, Wd, bd, Wa, ba) with weights stored [in, out].
       Returns (context [B, E] f32, alpha [B, L, 1] f32)."""
    B, L, E = encoder_output.shape
    _, H = hidden.shape
    we, be, wd, bd, wa, ba = params
    A = we.shape[1]
    del ba  # softmax shift invariance -> no effect on either output

    itemsize = jnp.dtype(compute_dtype).itemsize
    bb = _pick_batch_block(B, L, E, itemsize) if batch_block is None else batch_block
    assert B % bb == 0, "batch_block must divide B"
    assert bb == B or bb % 8 == 0, (
        "batch_block must equal B or be a multiple of 8 (TPU (8,128) block rule)")

    # Stream the big operands in the compute dtype (default bf16): halves HBM
    # bytes and doubles MXU peak; accumulation / softmax stays f32 in-kernel.
    enc = encoder_output.astype(compute_dtype)
    hid = hidden.astype(compute_dtype)

    # Pack the four small parameter operands into ONE input stream (6 -> 3 DMAs).
    P = -(-(E + H + 2) // 8) * 8                       # pad rows to multiple of 8
    packed = jnp.zeros((P, A), dtype=compute_dtype)
    packed = packed.at[:E].set(we.astype(compute_dtype))
    packed = packed.at[E:E + H].set(wd.astype(compute_dtype))
    packed = packed.at[E + H].set((be.reshape(A) + bd.reshape(A)).astype(compute_dtype))
    packed = packed.at[E + H + 1].set(wa.reshape(A).astype(compute_dtype))

    # VMEM budget: double-buffered enc/hid/outputs + single-buffered params,
    # with headroom for f32 intermediates.  Clamp to 32 MiB which fits every
    # generation (v5e 16 MiB scoped default / 128 MiB phys, v7x 32 / 64 MiB).
    vmem_est = 2 * (bb * L * E * itemsize + bb * H * itemsize
                    + bb * (E + L) * 4) + P * A * itemsize
    vmem_limit = int(min(max(4 * vmem_est, 16 << 20), 32 << 20))

    kernel_fn = functools.partial(attention_kernel,
                                  context_via_mxu=context_via_mxu,
                                  approx_recip=approx_recip)
    build = functools.partial(_build_call, kernel_fn, B=B, bb=bb, L=L, E=E, H=H,
                              P=P, A=A, vmem_limit=vmem_limit)
    try:
        ctx, alpha = build(single_buffer_params=True)(enc, hid, packed)
    except Exception:
        # Graceful fallback if the installed Pallas rejects pipeline_mode on
        # pallas_call BlockSpecs (semantics are identical, just double-buffered).
        ctx, alpha = build(single_buffer_params=False)(enc, hid, packed)

    # Trailing singleton of the PyTorch module re-attached in the wrapper
    # (free XLA layout plumbing instead of masked lane-1 stores).
    return ctx, alpha[..., None]


def reference(encoder_output, hidden, params):
    we, be, wd, bd, wa, ba = params
    enc_att = encoder_output @ we + be[0]                  # [B, L, A]
    dec_att = (hidden @ wd + bd[0])[:, None, :]            # [B, 1, A]
    a = jax.nn.relu(enc_att + dec_att)
    scores = (a @ wa + ba[0])[..., 0]                      # [B, L]
    alpha = jax.nn.softmax(scores, axis=1)[..., None]      # [B, L, 1]
    ctx = (alpha * encoder_output).sum(axis=1)             # [B, E]
    return ctx, alpha


if __name__ == "__main__":
    # Small shapes consistent with the module: SIZE^2 = 16, encoder_size = 32,
    # hidden_size = 32, attention_size = 32, batch = 2.
    B, L, E, H, A = 2, 16, 32, 32, 32

    key = jax.random.PRNGKey(0)
    k = jax.random.split(key, 8)
    encoder_output = jax.random.normal(k[0], (B, L, E), dtype=jnp.float32)
    hidden = jax.random.normal(k[1], (B, H), dtype=jnp.float32)

    we = jax.random.normal(k[2], (E, A), dtype=jnp.float32) * (1.0 / jnp.sqrt(E))
    be = jax.random.normal(k[3], (1, A), dtype=jnp.float32) * 0.01
    wd = jax.random.normal(k[4], (H, A), dtype=jnp.float32) * (1.0 / jnp.sqrt(H))
    bd = jax.random.normal(k[5], (1, A), dtype=jnp.float32) * 0.01
    wa = jax.random.normal(k[6], (A, 1), dtype=jnp.float32) * (1.0 / jnp.sqrt(A))
    ba = jax.random.normal(k[7], (1, 1), dtype=jnp.float32) * 0.01
    params = (we, be, wd, bd, wa, ba)

    ctx_gold, alpha_gold = reference(encoder_output, hidden, params)

    # 1) f32 path: verifies the kernel is algorithmically exact vs the reference.
    ctx32, alpha32 = attention_module(encoder_output, hidden, params,
                                      compute_dtype=jnp.float32,
                                      approx_recip=False)
    jax.block_until_ready((ctx32, alpha32))
    assert ctx32.shape == (B, E) and alpha32.shape == (B, L, 1)
    assert jnp.allclose(ctx32, ctx_gold, atol=1e-5, rtol=1e-5)
    assert jnp.allclose(alpha32, alpha_gold, atol=1e-5, rtol=1e-5)

    # 2) default fast path: bf16 streaming + EUP approx reciprocal
    #    (bf16-level tolerance vs the f32 reference).
    ctx16, alpha16 = attention_module(encoder_output, hidden, params,
                                      approx_recip=True)
    jax.block_until_ready((ctx16, alpha16))
    assert ctx16.shape == (B, E) and alpha16.shape == (B, L, 1)
    assert jnp.allclose(ctx16, ctx_gold, atol=5e-2, rtol=5e-2)
    assert jnp.allclose(alpha16, alpha_gold, atol=5e-2, rtol=5e-2)

    print("KERNEL_OK")
</pallas_src>

<mosaic_0001>
module attributes {stable_mosaic.version = 11 : i64} {
  func.func @attention_kernel(%arg0: i32, %arg1: memref<2x16x32xf32, #tpu.memory_space<vmem>>, %arg2: memref<2x32xf32, #tpu.memory_space<vmem>>, %arg3: memref<72x32xf32, #tpu.memory_space<vmem>>, %arg4: memref<2x32xf32, #tpu.memory_space<vmem>>, %arg5: memref<2x16xf32, #tpu.memory_space<vmem>>) attributes {dimension_semantics = [#tpu.dimension_semantics<parallel>], iteration_bounds = array<i64: 1>, scalar_prefetch = 0 : i64, scratch_operands = 0 : i64, tpu.core_type = #tpu.core_type<tc>, window_params = [{transform_indices = @transform_0, window_bounds = array<i64: 2, 16, 32>}, {transform_indices = @transform_1, window_bounds = array<i64: 2, 32>}, {pipeline_mode = #tpu.pipeline_mode<synchronous>, transform_indices = @transform_2, window_bounds = array<i64: 72, 32>}, {transform_indices = @transform_3, window_bounds = array<i64: 2, 32>}, {transform_indices = @transform_4, window_bounds = array<i64: 2, 16>}]} {
    %c0 = arith.constant 0 : index
    %c0_0 = arith.constant 0 : index
    %c0_1 = arith.constant 0 : index
    %0 = vector.load %arg1[%c0, %c0_0, %c0_1] : memref<2x16x32xf32, #tpu.memory_space<vmem>>, vector<2x16x32xf32>
    %c0_2 = arith.constant 0 : index
    %c0_3 = arith.constant 0 : index
    %1 = vector.load %arg3[%c0_2, %c0_3] : memref<72x32xf32, #tpu.memory_space<vmem>>, vector<32x32xf32>
    %c32 = arith.constant 32 : index
    %c0_4 = arith.constant 0 : index
    %2 = vector.load %arg3[%c32, %c0_4] : memref<72x32xf32, #tpu.memory_space<vmem>>, vector<32x32xf32>
    %c64 = arith.constant 64 : index
    %c0_5 = arith.constant 0 : index
    %3 = vector.load %arg3[%c64, %c0_5] : memref<72x32xf32, #tpu.memory_space<vmem>>, vector<1x32xf32>
    %c65 = arith.constant 65 : index
    %c0_6 = arith.constant 0 : index
    %4 = vector.load %arg3[%c65, %c0_6] : memref<72x32xf32, #tpu.memory_space<vmem>>, vector<1x32xf32>
    %5 = vector.shape_cast %0 : vector<2x16x32xf32> to vector<32x32xf32>
    %cst = arith.constant dense<0.000000e+00> : vector<32x32xf32>
    %6 = tpu.matmul %5, %1, %cst {dimension_numbers = #tpu.dot_dimension_numbers<[1], [0], [0], [1], [0, 0, 1, 1], [], []>} : vector<32x32xf32>, vector<32x32xf32>, vector<32x32xf32> -> vector<32x32xf32>
    %7 = vector.shape_cast %6 : vector<32x32xf32> to vector<2x16x32xf32>
    %c0_7 = arith.constant 0 : index
    %c0_8 = arith.constant 0 : index
    %8 = vector.load %arg2[%c0_7, %c0_8] : memref<2x32xf32, #tpu.memory_space<vmem>>, vector<2x32xf32>
    %cst_9 = arith.constant dense<0.000000e+00> : vector<2x32xf32>
    %9 = tpu.matmul %8, %2, %cst_9 {dimension_numbers = #tpu.dot_dimension_numbers<[1], [0], [0], [1], [0, 0, 1, 1], [], []>} : vector<2x32xf32>, vector<32x32xf32>, vector<2x32xf32> -> vector<2x32xf32>
    %10 = vector.broadcast %3 : vector<1x32xf32> to vector<2x32xf32>
    %11 = arith.addf %9, %10 : vector<2x32xf32>
    %12 = vector.shape_cast %11 : vector<2x32xf32> to vector<2x1x32xf32>
    %13 = vector.broadcast %12 : vector<2x1x32xf32> to vector<2x16x32xf32>
    %14 = arith.addf %7, %13 : vector<2x16x32xf32>
    %cst_10 = arith.constant 0.000000e+00 : f32
    %15 = vector.broadcast %cst_10 : f32 to vector<2x16x32xf32>
    %16 = arith.maximumf %14, %15 : vector<2x16x32xf32>
    %17 = vector.shape_cast %4 : vector<1x32xf32> to vector<1x1x32xf32>
    %18 = vector.broadcast %17 : vector<1x1x32xf32> to vector<2x16x32xf32>
    %19 = arith.mulf %16, %18 : vector<2x16x32xf32>
    %cst_11 = arith.constant dense<0.000000e+00> : vector<2x16xf32>
    %20 = vector.multi_reduction <add>, %19, %cst_11 [2] : vector<2x16x32xf32> to vector<2x16xf32>
    %cst_12 = arith.constant dense<0xFF800000> : vector<2xf32>
    %21 = vector.multi_reduction <maximumf>, %20, %cst_12 [1] : vector<2x16xf32> to vector<2xf32>
    %22 = vector.shape_cast %21 : vector<2xf32> to vector<2x1xf32>
    %23 = vector.broadcast %22 : vector<2x1xf32> to vector<2x16xf32>
    %24 = arith.subf %20, %23 : vector<2x16xf32>
    %25 = math.exp %24 : vector<2x16xf32>
    %cst_13 = arith.constant dense<0.000000e+00> : vector<2xf32>
    %26 = vector.multi_reduction <add>, %25, %cst_13 [1] : vector<2x16xf32> to vector<2xf32>
    %27 = vector.shape_cast %26 : vector<2xf32> to vector<2x1xf32>
    %28 = tpu.reciprocal %27 : vector<2x1xf32> -> vector<2x1xf32>
    %29 = vector.broadcast %28 : vector<2x1xf32> to vector<2x16xf32>
    %30 = arith.mulf %25, %29 : vector<2x16xf32>
    %c0_14 = arith.constant 0 : index
    %c0_15 = arith.constant 0 : index
    %31 = vector.load %arg5[%c0_14, %c0_15] : memref<2x16xf32, #tpu.memory_space<vmem>>, vector<2x16xf32>
    tpu.vector_store %arg5[%c0_14, %c0_15], %30 {strides = array<i32>} : memref<2x16xf32, #tpu.memory_space<vmem>>, vector<2x16xf32>,
    %32 = vector.shape_cast %30 : vector<2x16xf32> to vector<2x16x1xf32>
    %33 = vector.broadcast %32 : vector<2x16x1xf32> to vector<2x16x32xf32>
    %34 = arith.mulf %33, %0 : vector<2x16x32xf32>
    %cst_16 = arith.constant dense<0.000000e+00> : vector<2x32xf32>
    %35 = vector.multi_reduction <add>, %34, %cst_16 [1] : vector<2x16x32xf32> to vector<2x32xf32>
    %c0_17 = arith.constant 0 : index
    %c0_18 = arith.constant 0 : index
    %36 = vector.load %arg4[%c0_17, %c0_18] : memref<2x32xf32, #tpu.memory_space<vmem>>, vector<2x32xf32>
    tpu.vector_store %arg4[%c0_17, %c0_18], %35 {strides = array<i32>} : memref<2x32xf32, #tpu.memory_space<vmem>>, vector<2x32xf32>,
    return
  }
  func.func @transform_0(%arg0: i32) -> (i32, i32, i32) {
    %c0_i32 = arith.constant 0 : i32
    %c0_i32_0 = arith.constant 0 : i32
    %c0_i32_1 = arith.constant 0 : i32
    return %arg0, %c0_i32, %c0_i32_0 : i32, i32, i32
  }
  func.func @transform_1(%arg0: i32) -> (i32, i32) {
    %c0_i32 = arith.constant 0 : i32
    %c0_i32_0 = arith.constant 0 : i32
    return %arg0, %c0_i32 : i32, i32
  }
  func.func @transform_2(%arg0: i32) -> (i32, i32) {
    %c0_i32 = arith.constant 0 : i32
    %c0_i32_0 = arith.constant 0 : i32
    %c0_i32_1 = arith.constant 0 : i32
    return %c0_i32, %c0_i32_0 : i32, i32
  }
  func.func @transform_3(%arg0: i32) -> (i32, i32) {
    %c0_i32 = arith.constant 0 : i32
    %c0_i32_0 = arith.constant 0 : i32
    return %arg0, %c0_i32 : i32, i32
  }
  func.func @transform_4(%arg0: i32) -> (i32, i32) {
    %c0_i32 = arith.constant 0 : i32
    %c0_i32_0 = arith.constant 0 : i32
    return %arg0, %c0_i32 : i32, i32
  }
}

module attributes {stable_mosaic.version = 11 : i64} {
  func.func @attention_kernel(%arg0: i32, %arg1: memref<2x16x32xf32, #tpu.memory_space<vmem>>, %arg2: memref<2x32xf32, #tpu.memory_space<vmem>>, %arg3: memref<72x32xf32, #tpu.memory_space<vmem>>, %arg4: memref<2x32xf32, #tpu.memory_space<vmem>>, %arg5: memref<2x16xf32, #tpu.memory_space<vmem>>) attributes {dimension_semantics = [#tpu.dimension_semantics<parallel>], iteration_bounds = array<i64: 1>, scalar_prefetch = 0 : i64, scratch_operands = 0 : i64, tpu.core_type = #tpu.core_type<tc>, window_params = [{transform_indices = @transform_0, window_bounds = array<i64: 2, 16, 32>}, {transform_indices = @transform_1, window_bounds = array<i64: 2, 32>}, {pipeline_mode = #tpu.pipeline_mode<synchronous>, transform_indices = @transform_2, window_bounds = array<i64: 72, 32>}, {transform_indices = @transform_3, window_bounds = array<i64: 2, 32>}, {transform_indices = @transform_4, window_bounds = array<i64: 2, 16>}]} {
    %c0 = arith.constant 0 : index
    %c0_0 = arith.constant 0 : index
    %c0_1 = arith.constant 0 : index
    %0 = vector.load %arg1[%c0, %c0_0, %c0_1] : memref<2x16x32xf32, #tpu.memory_space<vmem>>, vector<2x16x32xf32>
    %c0_2 = arith.constant 0 : index
    %c0_3 = arith.constant 0 : index
    %1 = vector.load %arg3[%c0_2, %c0_3] : memref<72x32xf32, #tpu.memory_space<vmem>>, vector<32x32xf32>
    %c32 = arith.constant 32 : index
    %c0_4 = arith.constant 0 : index
    %2 = vector.load %arg3[%c32, %c0_4] : memref<72x32xf32, #tpu.memory_space<vmem>>, vector<32x32xf32>
    %c64 = arith.constant 64 : index
    %c0_5 = arith.constant 0 : index
    %3 = vector.load %arg3[%c64, %c0_5] : memref<72x32xf32, #tpu.memory_space<vmem>>, vector<1x32xf32>
    %c65 = arith.constant 65 : index
    %c0_6 = arith.constant 0 : index
    %4 = vector.load %arg3[%c65, %c0_6] : memref<72x32xf32, #tpu.memory_space<vmem>>, vector<1x32xf32>
    %5 = vector.shape_cast %0 : vector<2x16x32xf32> to vector<32x32xf32>
    %cst = arith.constant dense<0.000000e+00> : vector<32x32xf32>
    %6 = tpu.matmul %5, %1, %cst {dimension_numbers = #tpu.dot_dimension_numbers<[1], [0], [0], [1], [0, 0, 1, 1], [], []>} : vector<32x32xf32>, vector<32x32xf32>, vector<32x32xf32> -> vector<32x32xf32>
    %7 = vector.shape_cast %6 : vector<32x32xf32> to vector<2x16x32xf32>
    %c0_7 = arith.constant 0 : index
    %c0_8 = arith.constant 0 : index
    %8 = vector.load %arg2[%c0_7, %c0_8] : memref<2x32xf32, #tpu.memory_space<vmem>>, vector<2x32xf32>
    %cst_9 = arith.constant dense<0.000000e+00> : vector<2x32xf32>
    %9 = tpu.matmul %8, %2, %cst_9 {dimension_numbers = #tpu.dot_dimension_numbers<[1], [0], [0], [1], [0, 0, 1, 1], [], []>} : vector<2x32xf32>, vector<32x32xf32>, vector<2x32xf32> -> vector<2x32xf32>
    %10 = vector.broadcast %3 : vector<1x32xf32> to vector<2x32xf32>
    %11 = arith.addf %9, %10 : vector<2x32xf32>
    %12 = vector.shape_cast %11 : vector<2x32xf32> to vector<2x1x32xf32>
    %13 = vector.broadcast %12 : vector<2x1x32xf32> to vector<2x16x32xf32>
    %14 = arith.addf %7, %13 : vector<2x16x32xf32>
    %cst_10 = arith.constant 0.000000e+00 : f32
    %15 = vector.broadcast %cst_10 : f32 to vector<2x16x32xf32>
    %16 = arith.maximumf %14, %15 : vector<2x16x32xf32>
    %17 = vector.shape_cast %4 : vector<1x32xf32> to vector<1x1x32xf32>
    %18 = vector.broadcast %17 : vector<1x1x32xf32> to vector<2x16x32xf32>
    %19 = arith.mulf %16, %18 : vector<2x16x32xf32>
    %cst_11 = arith.constant dense<0.000000e+00> : vector<2x16xf32>
    %20 = vector.multi_reduction <add>, %19, %cst_11 [2] : vector<2x16x32xf32> to vector<2x16xf32>
    %cst_12 = arith.constant dense<0xFF800000> : vector<2xf32>
    %21 = vector.multi_reduction <maximumf>, %20, %cst_12 [1] : vector<2x16xf32> to vector<2xf32>
    %22 = vector.shape_cast %21 : vector<2xf32> to vector<2x1xf32>
    %23 = vector.broadcast %22 : vector<2x1xf32> to vector<2x16xf32>
    %24 = arith.subf %20, %23 : vector<2x16xf32>
    %25 = math.exp %24 : vector<2x16xf32>
    %cst_13 = arith.constant dense<0.000000e+00> : vector<2xf32>
    %26 = vector.multi_reduction <add>, %25, %cst_13 [1] : vector<2x16xf32> to vector<2xf32>
    %27 = vector.shape_cast %26 : vector<2xf32> to vector<2x1xf32>
    %28 = tpu.reciprocal %27 : vector<2x1xf32> -> vector<2x1xf32>
    %29 = vector.broadcast %28 : vector<2x1xf32> to vector<2x16xf32>
    %30 = arith.mulf %25, %29 : vector<2x16xf32>
    %c0_14 = arith.constant 0 : index
    %c0_15 = arith.constant 0 : index
    %31 = vector.load %arg5[%c0_14, %c0_15] : memref<2x16xf32, #tpu.memory_space<vmem>>, vector<2x16xf32>
    tpu.vector_store %arg5[%c0_14, %c0_15], %30 {strides = array<i32>} : memref<2x16xf32, #tpu.memory_space<vmem>>, vector<2x16xf32>,
    %32 = vector.shape_cast %30 : vector<2x16xf32> to vector<2x16x1xf32>
    %33 = vector.broadcast %32 : vector<2x16x1xf32> to vector<2x16x32xf32>
    %34 = arith.mulf %33, %0 : vector<2x16x32xf32>
    %cst_16 = arith.constant dense<0.000000e+00> : vector<2x32xf32>
    %35 = vector.multi_reduction <add>, %34, %cst_16 [1] : vector<2x16x32xf32> to vector<2x32xf32>
    %c0_17 = arith.constant 0 : index
    %c0_18 = arith.constant 0 : index
    %36 = vector.load %arg4[%c0_17, %c0_18] : memref<2x32xf32, #tpu.memory_space<vmem>>, vector<2x32xf32>
    tpu.vector_store %arg4[%c0_17, %c0_18], %35 {strides = array<i32>} : memref<2x32xf32, #tpu.memory_space<vmem>>, vector<2x32xf32>,
    return
  }
  func.func @transform_0(%arg0: i32) -> (i32, i32, i32) {
    %c0_i32 = arith.constant 0 : i32
    %c0_i32_0 = arith.constant 0 : i32
    %c0_i32_1 = arith.constant 0 : i32
    return %arg0, %c0_i32, %c0_i32_0 : i32, i32, i32
  }
  func.func @transform_1(%arg0: i32) -> (i32, i32) {
    %c0_i32 = arith.constant 0 : i32
    %c0_i32_0 = arith.constant 0 : i32
    return %arg0, %c0_i32 : i32, i32
  }
  func.func @transform_2(%arg0: i32) -> (i32, i32) {
    %c0_i32 = arith.constant 0 : i32
    %c0_i32_0 = arith.constant 0 : i32
    %c0_i32_1 = arith.constant 0 : i32
    return %c0_i32, %c0_i32_0 : i32, i32
  }
  func.func @transform_3(%arg0: i32) -> (i32, i32) {
    %c0_i32 = arith.constant 0 : i32
    %c0_i32_0 = arith.constant 0 : i32
    return %arg0, %c0_i32 : i32, i32
  }
  func.func @transform_4(%arg0: i32) -> (i32, i32) {
    %c0_i32 = arith.constant 0 : i32
    %c0_i32_0 = arith.constant 0 : i32
    return %arg0, %c0_i32 : i32, i32
  }
}

</mosaic_0001>

<llo_original>
// kernel: tpu_custom_call.1
$region0: #{tpu_custom_call.1}
  #allocation0 [shape = 'u32[]', space=smem, size = 0x4, offset = 0x4, fixed_abs, tag = 'smem constant byte address 0x4 - core index']
  #allocation1 [shape = 'u32[144,128]{1,0:T(1,128)}', space=vmem, size = 0x12000, scoped, tag = 'internal scratch']
  %s0 = inlined_call_operand.vmem [shape: f32[2,16,32], index: 0, kind: input, shape index: {}]
  %s1 = inlined_call_operand.vmem [shape: f32[2,32], index: 1, kind: input, shape index: {}]
  %s2 = inlined_call_operand.vmem [shape: f32[72,32], index: 2, kind: input, shape index: {}]
  %s3 = inlined_call_operand.hbm [shape: f32[2,32], index: 3, kind: output, shape index: {0}]
  %s4 = inlined_call_operand.hbm [shape: f32[2,16], index: 4, kind: output, shape index: {1}]
  %5 = xla_tuple %s3, %s4
  %s6 = sld [smem:[#allocation0]]
  $region30: #{tpu_custom_call.1} parent=0
    _
  %s8 = ssub.s32 1, %s6
  %s9 = scalar_select 0, %s8, %s6
  $region1: #{tpu_custom_call.1} parent=0
    #allocation2 [shape = 'u8[1024]{0}', space=vmem, size = 0x400, scoped, tag = 'output window, operand 0, single buffered']
    #allocation3 [shape = 's32[1]{0}', space=sflag, size = 0x4, scoped, tag = 'scoped memory for tpu_custom_call.1']
    #allocation4 [shape = 'u8[1024]{0}', space=vmem, size = 0x400, scoped, tag = 'output window, operand 1, single buffered']
    #allocation5 [shape = 's32[1]{0}', space=sflag, size = 0x4, scoped, tag = 'scoped memory for tpu_custom_call.1']
    %10 = vsyncpa [#allocation3], 0
    %11 = vsyncpa [#allocation5], 0
    // Predicated region
    $region2: #{tpu_custom_call.1} parent=1 // pred_check
      _
    $region3: #{tpu_custom_call.1} parent=1 // pred_check_branch
      %13 = sbr.rel (0) target = $region5
    $region4: #{tpu_custom_call.1} parent=1 // pred_region
      _
    $region5: #{tpu_custom_call.1} parent=1 // pred_fallthru
      _
    // Predicated region
    $region6: #{tpu_custom_call.1} parent=1 // pred_check
      _
    $region7: #{tpu_custom_call.1} parent=1 // pred_check_branch
      %15 = sbr.rel (0) target = $region9
    $region8: #{tpu_custom_call.1} parent=1 // pred_region
      _
    $region9: #{tpu_custom_call.1} parent=1 // pred_fallthru
      _
    // Predicated region
    $region10: #{tpu_custom_call.1} parent=1 // pred_check
      _
    $region11: #{tpu_custom_call.1} parent=1 // pred_check_branch
      %17 = sbr.rel (0) target = $region13
    $region12: #{tpu_custom_call.1} parent=1 // pred_region
      _
    $region13: #{tpu_custom_call.1} parent=1 // pred_fallthru
      _
    %v18 = vld [vmem:[%s0] sm:$0xff]
    %v19 = vld [vmem:[%s0 + $0x8] sm:$0xff]
    %v20 = vld [vmem:[%s0 + $0x10] sm:$0xff]
    %v21 = vld [vmem:[%s0 + $0x18] sm:$0xff]
    %v22 = vld [vmem:[%s2] sm:$0xff]
    %v23 = vld [vmem:[%s2 + $0x8] sm:$0xff]
    %v24 = vld [vmem:[%s2 + $0x10] sm:$0xff]
    %v25 = vld [vmem:[%s2 + $0x18] sm:$0xff]
    %v26 = vld [vmem:[%s2 + $0x20] sm:$0xff]
    %v27 = vld [vmem:[%s2 + $0x28] sm:$0xff]
    %v28 = vld [vmem:[%s2 + $0x30] sm:$0xff]
    %v29 = vld [vmem:[%s2 + $0x38] sm:$0xff]
    %v30 = vld [vmem:[%s2 + $0x40] sm:$0x1]
    %v31 = vld [vmem:[%s2 + $0x41] sm:$0x1]
    %vm32 = vcmask 261120
    %v34 = vsel %vm32, %v18, 0
    %v37 = vsel %vm32, %v19, 0
    %v40 = vsel %vm32, %v20, 0
    %v43 = vsel %vm32, %v21, 0
    %45 = vmatprep.subr.mxu0 0.0
    %46 = vmatpush1.msra.mxu0 0.0
    %47 = vmatprep.subr.mxu0 0.0
    %48 = vmatpush1.msra.mxu0 0.0
    %49 = vmatprep.subr.mxu0 0.0
    %50 = vmatpush1.msra.mxu0 0.0
    %51 = vmatprep.subr.mxu0 0.0
    %52 = vmatpush1.msra.mxu0 0.0
    %53 = vmatprep.subr.mxu0 0.0
    %54 = vmatpush1.msra.mxu0 0.0
    %55 = vmatprep.subr.mxu0 0.0
    %56 = vmatpush1.msra.mxu0 0.0
    %57 = vmatprep.subr.mxu0 0.0
    %58 = vmatpush1.msra.mxu0 0.0
    %59 = vmatprep.subr.mxu0 0.0
    %60 = vmatpush1.msra.mxu0 0.0
    %61 = vmatprep.subr.mxu0 0.0
    %62 = vmatpush1.msra.mxu0 0.0
    %63 = vmatprep.subr.mxu0 0.0
    %64 = vmatpush1.msra.mxu0 0.0
    %65 = vmatprep.subr.mxu0 0.0
    %66 = vmatpush1.msra.mxu0 0.0
    %67 = vmatprep.subr.mxu0 0.0
    %68 = vmatpush1.msra.mxu0 0.0
    %69 = vmatprep.subr.mxu0 0.0
    %70 = vmatpush1.msra.mxu0 %v25
    %71 = vmatprep.subr.mxu0 0.0
    %72 = vmatpush1.msra.mxu0 %v24
    %73 = vmatprep.subr.mxu0 0.0
    %74 = vmatpush1.msra.mxu0 %v23
    %75 = vmatprep.subr.mxu0 0.0
    %76 = vmatpush1.msra.mxu0 %v22
    %77 = vmatprep.subr.mxu0 0.0
    %78 = vmatpush2.msra.mxu0 0.0
    %79 = vmatprep.subr.mxu0 0.0
    %80 = vmatpush2.msra.mxu0 0.0
    %81 = vmatprep.subr.mxu0 0.0
    %82 = vmatpush2.msra.mxu0 0.0
    %83 = vmatprep.subr.mxu0 0.0
    %84 = vmatpush2.msra.mxu0 0.0
    %85 = vmatprep.subr.mxu0 0.0
    %86 = vmatpush2.msra.mxu0 0.0
    %87 = vmatprep.subr.mxu0 0.0
    %88 = vmatpush2.msra.mxu0 0.0
    %89 = vmatprep.subr.mxu0 0.0
    %90 = vmatpush2.msra.mxu0 0.0
    %91 = vmatprep.subr.mxu0 0.0
    %92 = vmatpush2.msra.mxu0 0.0
    %93 = vmatprep.subr.mxu0 0.0
    %94 = vmatpush2.msra.mxu0 0.0
    %95 = vmatprep.subr.mxu0 0.0
    %96 = vmatpush2.msra.mxu0 0.0
    %97 = vmatprep.subr.mxu0 0.0
    %98 = vmatpush2.msra.mxu0 0.0
    %99 = vmatprep.subr.mxu0 0.0
    %100 = vmatpush2.msra.mxu0 0.0
    %101 = vmatprep.subr.mxu0 0.0
    %102 = vmatpush2.msra.mxu0 0.0
    %103 = vmatprep.subr.mxu0 0.0
    %104 = vmatpush2.msra.mxu0 0.0
    %105 = vmatprep.subr.mxu0 0.0
    %106 = vmatpush2.msra.mxu0 0.0
    %107 = vmatprep.subr.mxu0 0.0
    %108 = vmatpush2.msra.mxu0 0.0
    %109 = vmatprep.mubr.f32.mxu0 0.0
    %110 = vmatmul.mubr.f32.gmra.mxu0 %v34
    %v111 = vpop.f32.mrf.mxu0
    %v112 = vadd.f32 0.0, %v111
    %v113 = vpop.f32.mrf.mxu0
    %114 = vmatprep.mubr.f32.mxu0 0.0
    %115 = vmatmul.mubr.f32.gmra.mxu0 %v37
    %v116 = vpop.f32.mrf.mxu0
    %v117 = vadd.f32 0.0, %v116
    %v118 = vpop.f32.mrf.mxu0
    %119 = vmatprep.mubr.f32.mxu0 0.0
    %120 = vmatmul.mubr.f32.gmra.mxu0 %v40
    %v121 = vpop.f32.mrf.mxu0
    %v122 = vadd.f32 0.0, %v121
    %v123 = vpop.f32.mrf.mxu0
    %124 = vmatprep.mubr.f32.mxu0 0.0
    %125 = vmatmul.mubr.f32.gmra.mxu0 %v43
    %v126 = vpop.f32.mrf.mxu0
    %v127 = vadd.f32 0.0, %v126
    %v128 = vpop.f32.mrf.mxu0
    %129 = vdwg.mxu0
    %v130 = vld [vmem:[%s1] sm:$0x3]
    %v131 = vlaneseq
    %v132 = vshrl.u32 %v131, 7
    %v133 = vsub.s32 0, %v132
    %v134 = vrot.slane %v30, %v133
    %v136 = vsel %vm32, %v130, 0
    %138 = vmatprep.subr.mxu0 0.0
    %139 = vmatpush1.msra.mxu0 0.0
    %140 = vmatprep.subr.mxu0 0.0
    %141 = vmatpush1.msra.mxu0 0.0
    %142 = vmatprep.subr.mxu0 0.0
    %143 = vmatpush1.msra.mxu0 0.0
    %144 = vmatprep.subr.mxu0 0.0
    %145 = vmatpush1.msra.mxu0 0.0
    %146 = vmatprep.subr.mxu0 0.0
    %147 = vmatpush1.msra.mxu0 0.0
    %148 = vmatprep.subr.mxu0 0.0
    %149 = vmatpush1.msra.mxu0 0.0
    %150 = vmatprep.subr.mxu0 0.0
    %151 = vmatpush1.msra.mxu0 0.0
    %152 = vmatprep.subr.mxu0 0.0
    %153 = vmatpush1.msra.mxu0 0.0
    %154 = vmatprep.subr.mxu0 0.0
    %155 = vmatpush1.msra.mxu0 0.0
    %156 = vmatprep.subr.mxu0 0.0
    %157 = vmatpush1.msra.mxu0 0.0
    %158 = vmatprep.subr.mxu0 0.0
    %159 = vmatpush1.msra.mxu0 0.0
    %160 = vmatprep.subr.mxu0 0.0
    %161 = vmatpush1.msra.mxu0 0.0
    %162 = vmatprep.subr.mxu0 0.0
    %163 = vmatpush1.msra.mxu0 %v29
    %164 = vmatprep.subr.mxu0 0.0
    %165 = vmatpush1.msra.mxu0 %v28
    %166 = vmatprep.subr.mxu0 0.0
    %167 = vmatpush1.msra.mxu0 %v27
    %168 = vmatprep.subr.mxu0 0.0
    %169 = vmatpush1.msra.mxu0 %v26
    %170 = vmatprep.subr.mxu0 0.0
    %171 = vmatpush2.msra.mxu0 0.0
    %172 = vmatprep.subr.mxu0 0.0
    %173 = vmatpush2.msra.mxu0 0.0
    %174 = vmatprep.subr.mxu0 0.0
    %175 = vmatpush2.msra.mxu0 0.0
    %176 = vmatprep.subr.mxu0 0.0
    %177 = vmatpush2.msra.mxu0 0.0
    %178 = vmatprep.subr.mxu0 0.0
    %179 = vmatpush2.msra.mxu0 0.0
    %180 = vmatprep.subr.mxu0 0.0
    %181 = vmatpush2.msra.mxu0 0.0
    %182 = vmatprep.subr.mxu0 0.0
    %183 = vmatpush2.msra.mxu0 0.0
    %184 = vmatprep.subr.mxu0 0.0
    %185 = vmatpush2.msra.mxu0 0.0
    %186 = vmatprep.subr.mxu0 0.0
    %187 = vmatpush2.msra.mxu0 0.0
    %188 = vmatprep.subr.mxu0 0.0
    %189 = vmatpush2.msra.mxu0 0.0
    %190 = vmatprep.subr.mxu0 0.0
    %191 = vmatpush2.msra.mxu0 0.0
    %192 = vmatprep.subr.mxu0 0.0
    %193 = vmatpush2.msra.mxu0 0.0
    %194 = vmatprep.subr.mxu0 0.0
    %195 = vmatpush2.msra.mxu0 0.0
    %196 = vmatprep.subr.mxu0 0.0
    %197 = vmatpush2.msra.mxu0 0.0
    %198 = vmatprep.subr.mxu0 0.0
    %199 = vmatpush2.msra.mxu0 0.0
    %200 = vmatprep.subr.mxu0 0.0
    %201 = vmatpush2.msra.mxu0 0.0
    %202 = vmatprep.mubr.f32.mxu0 0.0
    %203 = vmatmul.mubr.f32.gmra.mxu0 %v136
    %v204 = vpop.f32.mrf.mxu0
    %v205 = vadd.f32 %v134, %v204
    %v206 = vpop.f32.mrf.mxu0
    %207 = vdwg.mxu0
    %v210 = vunpack.c.l.s4 1966171168
    %v211 = vunpack.c.0.s8 %v210
    %v212 = vlaneseq
    %v213 = vshrl.u32 %v212, 7
    %v214 = vsub.s32 %v211, %v213
    %v215 = vrot.slane %v205, %v214
    %v216 = vcombine.high %v215, %v215
    %v218 = vunpack.c.l.s4 1966171168
    %v219 = vunpack.c.0.s8 %v218
    %v220 = vlaneseq
    %v221 = vshrl.u32 %v220, 7
    %v222 = vsub.s32 %v219, %v221
    %v223 = vrot.slane %v215, %v222
    %v225 = vunpack.c.l.s4 1966171168
    %v226 = vunpack.c.0.s8 %v225
    %v227 = vlaneseq
    %v228 = vshrl.u32 %v227, 7
    %v229 = vsub.s32 %v226, %v228
    %v230 = vrot.slane %v216, %v229
    %v231 = vlaneseq
    %v232 = vshrl.u32 %v231, 7
    %v233 = vsub.s32 0, %v232
    %v234 = vrot.slane %v223, %v233
    %v235 = vlaneseq
    %v236 = vshrl.u32 %v235, 7
    %v237 = vsub.s32 0, %v236
    %v238 = vrot.slane %v230, %v237
    %v241 = vadd.f32 %v112, %v234
    %v242 = vadd.f32 %v117, %v234
    %v243 = vadd.f32 %v122, %v238
    %v244 = vadd.f32 %v127, %v238
    %v245 = vmax.f32 %v241, 0.0
    %v246 = vmax.f32 %v242, 0.0
    %v247 = vmax.f32 %v243, 0.0
    %v248 = vmax.f32 %v244, 0.0
    %v249 = vlaneseq
    %v250 = vshrl.u32 %v249, 7
    %v251 = vsub.s32 0, %v250
    %v252 = vrot.slane %v31, %v251
    %v253 = vmul.f32 %v245, %v252
    %v254 = vmul.f32 %v246, %v252
    %v255 = vmul.f32 %v247, %v252
    %v256 = vmul.f32 %v248, %v252
    %v257 = vsel %vm32, %v253, 0.0
    %258 = vadd.xlane.f32.xlu0 %v257
    %v259 = vpop.xlane.xlu0 %258
    %v260 = vsel %vm32, %v254, 0.0
    %261 = vadd.xlane.f32.xlu0 %v260
    %v262 = vpop.xlane.xlu0 %261
    %v263 = vsel %vm32, %v255, 0.0
    %264 = vadd.xlane.f32.xlu0 %v263
    %v265 = vpop.xlane.xlu0 %264
    %v266 = vsel %vm32, %v256, 0.0
    %267 = vadd.xlane.f32.xlu0 %v266
    %v268 = vpop.xlane.xlu0 %267
    %v273 = vlaneseq
    %v274 = vand.u32 %v273, 127
    %v275 = vlaneseq
    %v276 = vshrl.u32 %v275, 7
    %v277 = vsub.s32 %v274, %v276
    %v278 = vrot.slane %v259, %v277
    %v279 = vadd.s32 %v274, 4294967288
    %v280 = vlaneseq
    %v281 = vshrl.u32 %v280, 7
    %v282 = vsub.s32 %v279, %v281
    %v283 = vrot.slane %v262, %v282
    %vm284 = vcmask 130112
    %v285 = vsel %vm284, %v283, %v278
    %v286 = vlaneseq
    %v287 = vshrl.u32 %v286, 7
    %v288 = vsub.s32 %v274, %v287
    %v289 = vrot.slane %v265, %v288
    %v290 = vlaneseq
    %v291 = vshrl.u32 %v290, 7
    %v292 = vsub.s32 %v279, %v291
    %v293 = vrot.slane %v268, %v292
    %v294 = vsel %vm284, %v293, %v289
    %vm295 = vcmask 1041409
    %v296 = vsel %vm295, %v294, %v285
    %vm298 = vcmask 123904
    %v299 = vsel %vm298, %v296, -inf
    %300 = vmax.xlane.f32.xlu0 %v299
    %v301 = vpop.xlane.xlu0 %300
    %v303 = vlaneseq
    %v304 = vshrl.u32 %v303, 7
    %v305 = vsub.s32 0, %v304
    %v306 = vrot.slane %v301, %v305
    %v307 = vlaneseq
    %v308 = vshrl.u32 %v307, 7
    %v309 = vsub.s32 1, %v308
    %v310 = vrot.slane %v301, %v309
    %v313 = vsub.f32 %v259, %v306
    %v314 = vsub.f32 %v262, %v306
    %v315 = vsub.f32 %v265, %v310
    %v316 = vsub.f32 %v268, %v310
    %v317 = vmul.f32 %v313, 1.442695
    %v318 = vpow.pop %v317
    %v319 = vmul.f32 %v314, 1.442695
    %v320 = vpow.pop %v319
    %v321 = vmul.f32 %v315, 1.442695
    %v322 = vpow.pop %v321
    %v323 = vmul.f32 %v316, 1.442695
    %v324 = vpow.pop %v323
    %329 = vset.pattern.permute.xlu0 0
    %330 = vperm.xlu0 %329, %v318
    %v331 = vpop.permute.xlu0 %330
    %332 = vset.pattern.permute.xlu0 0
    %333 = vperm.xlu0 %332, %v320
    %v334 = vpop.permute.xlu0 %333
    %335 = vset.pattern.permute.xlu0 0
    %336 = vperm.xlu0 %335, %v322
    %v337 = vpop.permute.xlu0 %336
    %338 = vset.pattern.permute.xlu0 0
    %339 = vperm.xlu0 %338, %v324
    %v340 = vpop.permute.xlu0 %339
    %v341 = vlaneseq
    %v342 = vshrl.u32 %v341, 7
    %v343 = vsub.s32 %v274, %v342
    %v344 = vrot.slane %v331, %v343
    %v345 = vlaneseq
    %v346 = vshrl.u32 %v345, 7
    %v347 = vsub.s32 %v279, %v346
    %v348 = vrot.slane %v334, %v347
    %v349 = vsel %vm284, %v348, %v344
    %v350 = vlaneseq
    %v351 = vshrl.u32 %v350, 7
    %v352 = vsub.s32 %v274, %v351
    %v353 = vrot.slane %v337, %v352
    %v354 = vlaneseq
    %v355 = vshrl.u32 %v354, 7
    %v356 = vsub.s32 %v279, %v355
    %v357 = vrot.slane %v340, %v356
    %v358 = vsel %vm284, %v357, %v353
    %v359 = vsel %vm295, %v358, %v349
    %v361 = vsel %vm298, %v359, 0.0
    %362 = vadd.xlane.f32.xlu0 %v361
    %v363 = vpop.xlane.xlu0 %362
    %v364 = vrcp.pop %v363
    %v366 = vlaneseq
    %v367 = vshrl.u32 %v366, 7
    %v368 = vsub.s32 0, %v367
    %v369 = vrot.slane %v364, %v368
    %v370 = vlaneseq
    %v371 = vshrl.u32 %v370, 7
    %v372 = vsub.s32 1, %v371
    %v373 = vrot.slane %v364, %v372
    %v376 = vmul.f32 %v318, %v369
    %v377 = vmul.f32 %v320, %v369
    %v378 = vmul.f32 %v322, %v373
    %v379 = vmul.f32 %v324, %v373
    %384 = vset.pattern.permute.xlu0 0
    %385 = vperm.xlu0 %384, %v376
    %v386 = vpop.permute.xlu0 %385
    %387 = vset.pattern.permute.xlu0 0
    %388 = vperm.xlu0 %387, %v377
    %v389 = vpop.permute.xlu0 %388
    %390 = vset.pattern.permute.xlu0 0
    %391 = vperm.xlu0 %390, %v378
    %v392 = vpop.permute.xlu0 %391
    %393 = vset.pattern.permute.xlu0 0
    %394 = vperm.xlu0 %393, %v379
    %v395 = vpop.permute.xlu0 %394
    %v396 = vlaneseq
    %v397 = vshrl.u32 %v396, 7
    %v398 = vsub.s32 %v274, %v397
    %v399 = vrot.slane %v386, %v398
    %v400 = vlaneseq
    %v401 = vshrl.u32 %v400, 7
    %v402 = vsub.s32 %v279, %v401
    %v403 = vrot.slane %v389, %v402
    %v404 = vsel %vm284, %v403, %v399
    %v405 = vlaneseq
    %v406 = vshrl.u32 %v405, 7
    %v407 = vsub.s32 %v274, %v406
    %v408 = vrot.slane %v392, %v407
    %v409 = vlaneseq
    %v410 = vshrl.u32 %v409, 7
    %v411 = vsub.s32 %v279, %v410
    %v412 = vrot.slane %v395, %v411
    %v413 = vsel %vm284, %v412, %v408
    %v414 = vsel %vm295, %v413, %v404
    %416 = vst.msk [vmem:[#allocation4] sm:$0x3] %vm298, %v414
    %v421 = vmul.f32 %v386, %v18
    %v422 = vmul.f32 %v389, %v19
    %v423 = vmul.f32 %v392, %v20
    %v424 = vmul.f32 %v395, %v21
    %v425 = vsel %vm32, %v421, 0.0
    %v426 = vsel %vm32, %v422, 0.0
    %v427 = vadd.f32 %v425, %v426
    %v428 = vrot.slane %v427, 4
    %v429 = vadd.f32 %v427, %v428
    %v430 = vrot.slane %v429, 2
    %v431 = vadd.f32 %v429, %v430
    %v432 = vrot.slane %v431, 1
    %v433 = vadd.f32 %v431, %v432
    %v434 = vsel %vm32, %v423, 0.0
    %v435 = vsel %vm32, %v424, 0.0
    %v436 = vadd.f32 %v434, %v435
    %v437 = vrot.slane %v436, 4
    %v438 = vadd.f32 %v436, %v437
    %v439 = vrot.slane %v438, 2
    %v440 = vadd.f32 %v438, %v439
    %v441 = vrot.slane %v440, 1
    %v442 = vadd.f32 %v440, %v441
    %v445 = vsel %vm295, %v442, %v433
    %vm447 = vcmask 254976
    %448 = vst.msk [vmem:[#allocation2] sm:$0x3] %vm447, %v445
    // Predicated region
    $region14: #{tpu_custom_call.1} parent=1 // pred_check
      _
    $region15: #{tpu_custom_call.1} parent=1 // pred_check_branch
      %450 = sbr.rel (0) target = $region17
    $region16: #{tpu_custom_call.1} parent=1 // pred_region
      %s452 = ssub.s32 32, 32
      %453 = vsyncadd [#allocation3], %s452
      %s455 = sshll.u32 [#allocation2], 4
      %s456 = int_to_ptr.vmem [resolvable:$true] %s455
      %458 = dma.vmem_to_hbm [thread:$0]  %s456, 32, %s3, [#allocation3]
    $region17: #{tpu_custom_call.1} parent=1 // pred_fallthru
      _
    // Predicated region
    $region18: #{tpu_custom_call.1} parent=1 // pred_check
      _
    $region19: #{tpu_custom_call.1} parent=1 // pred_check_branch
      %460 = sbr.rel (0) target = $region21
    $region20: #{tpu_custom_call.1} parent=1 // pred_region
      %s462 = ssub.s32 32, 32
      %463 = vsyncadd [#allocation5], %s462
      %s465 = sshll.u32 [#allocation4], 4
      %s466 = int_to_ptr.vmem [resolvable:$true] %s465
      %468 = dma.vmem_to_hbm [thread:$0]  %s466, 32, %s4, [#allocation5]
    $region21: #{tpu_custom_call.1} parent=1 // pred_fallthru
      _
    // Predicated region
    $region22: #{tpu_custom_call.1} parent=1 // pred_check
      _
    $region23: #{tpu_custom_call.1} parent=1 // pred_check_branch
      %470 = sbr.rel (0) target = $region25
    $region24: #{tpu_custom_call.1} parent=1 // pred_region
      %471 = dma.done [#allocation3], 32
    $region25: #{tpu_custom_call.1} parent=1 // pred_fallthru
      _
    // Predicated region
    $region26: #{tpu_custom_call.1} parent=1 // pred_check
      _
    $region27: #{tpu_custom_call.1} parent=1 // pred_check_branch
      %473 = sbr.rel (0) target = $region29
    $region28: #{tpu_custom_call.1} parent=1 // pred_region
      %474 = dma.done [#allocation5], 32
    $region29: #{tpu_custom_call.1} parent=1 // pred_fallthru
      _
    %475 = vsyncpa [#allocation3], 1
    %476 = vsyncpa [#allocation5], 1

// kernel: tpu_custom_call.1
$region0: #{tpu_custom_call.1}
  #allocation0 [shape = 'u32[]', space=smem, size = 0x4, offset = 0x4, fixed_abs, tag = 'smem constant byte address 0x4 - core index']
  #allocation1 [shape = 'u32[144,128]{1,0:T(1,128)}', space=vmem, size = 0x12000, scoped, tag = 'internal scratch']
  %s0 = inlined_call_operand.vmem [shape: f32[2,16,32], index: 0, kind: input, shape index: {}]
  %s1 = inlined_call_operand.vmem [shape: f32[2,32], index: 1, kind: input, shape index: {}]
  %s2 = inlined_call_operand.vmem [shape: f32[72,32], index: 2, kind: input, shape index: {}]
  %s3 = inlined_call_operand.hbm [shape: f32[2,32], index: 3, kind: output, shape index: {0}]
  %s4 = inlined_call_operand.hbm [shape: f32[2,16], index: 4, kind: output, shape index: {1}]
  %5 = xla_tuple %s3, %s4
  %s6 = sld [smem:[#allocation0]]
  $region30: #{tpu_custom_call.1} parent=0
    _
  %s8 = ssub.s32 1, %s6
  %s9 = scalar_select 0, %s8, %s6
  $region1: #{tpu_custom_call.1} parent=0
    #allocation2 [shape = 'u8[1024]{0}', space=vmem, size = 0x400, scoped, tag = 'output window, operand 0, single buffered']
    #allocation3 [shape = 's32[1]{0}', space=sflag, size = 0x4, scoped, tag = 'scoped memory for tpu_custom_call.1']
    #allocation4 [shape = 'u8[1024]{0}', space=vmem, size = 0x400, scoped, tag = 'output window, operand 1, single buffered']
    #allocation5 [shape = 's32[1]{0}', space=sflag, size = 0x4, scoped, tag = 'scoped memory for tpu_custom_call.1']
    %10 = vsyncpa [#allocation3], 0
    %11 = vsyncpa [#allocation5], 0
    // Predicated region
    $region2: #{tpu_custom_call.1} parent=1 // pred_check
      _
    $region3: #{tpu_custom_call.1} parent=1 // pred_check_branch
      %13 = sbr.rel (0) target = $region5
    $region4: #{tpu_custom_call.1} parent=1 // pred_region
      _
    $region5: #{tpu_custom_call.1} parent=1 // pred_fallthru
      _
    // Predicated region
    $region6: #{tpu_custom_call.1} parent=1 // pred_check
      _
    $region7: #{tpu_custom_call.1} parent=1 // pred_check_branch
      %15 = sbr.rel (0) target = $region9
    $region8: #{tpu_custom_call.1} parent=1 // pred_region
      _
    $region9: #{tpu_custom_call.1} parent=1 // pred_fallthru
      _
    // Predicated region
    $region10: #{tpu_custom_call.1} parent=1 // pred_check
      _
    $region11: #{tpu_custom_call.1} parent=1 // pred_check_branch
      %17 = sbr.rel (0) target = $region13
    $region12: #{tpu_custom_call.1} parent=1 // pred_region
      _
    $region13: #{tpu_custom_call.1} parent=1 // pred_fallthru
      _
    %v18 = vld [vmem:[%s0] sm:$0xff]
    %v19 = vld [vmem:[%s0 + $0x8] sm:$0xff]
    %v20 = vld [vmem:[%s0 + $0x10] sm:$0xff]
    %v21 = vld [vmem:[%s0 + $0x18] sm:$0xff]
    %v22 = vld [vmem:[%s2] sm:$0xff]
    %v23 = vld [vmem:[%s2 + $0x8] sm:$0xff]
    %v24 = vld [vmem:[%s2 + $0x10] sm:$0xff]
    %v25 = vld [vmem:[%s2 + $0x18] sm:$0xff]
    %v26 = vld [vmem:[%s2 + $0x20] sm:$0xff]
    %v27 = vld [vmem:[%s2 + $0x28] sm:$0xff]
    %v28 = vld [vmem:[%s2 + $0x30] sm:$0xff]
    %v29 = vld [vmem:[%s2 + $0x38] sm:$0xff]
    %v30 = vld [vmem:[%s2 + $0x40] sm:$0x1]
    %v31 = vld [vmem:[%s2 + $0x41] sm:$0x1]
    %vm32 = vcmask 261120
    %v34 = vsel %vm32, %v18, 0
    %v37 = vsel %vm32, %v19, 0
    %v40 = vsel %vm32, %v20, 0
    %v43 = vsel %vm32, %v21, 0
    %45 = vmatprep.subr.mxu0 0.0
    %46 = vmatpush1.msra.mxu0 0.0
    %47 = vmatprep.subr.mxu0 0.0
    %48 = vmatpush1.msra.mxu0 0.0
    %49 = vmatprep.subr.mxu0 0.0
    %50 = vmatpush1.msra.mxu0 0.0
    %51 = vmatprep.subr.mxu0 0.0
    %52 = vmatpush1.msra.mxu0 0.0
    %53 = vmatprep.subr.mxu0 0.0
    %54 = vmatpush1.msra.mxu0 0.0
    %55 = vmatprep.subr.mxu0 0.0
    %56 = vmatpush1.msra.mxu0 0.0
    %57 = vmatprep.subr.mxu0 0.0
    %58 = vmatpush1.msra.mxu0 0.0
    %59 = vmatprep.subr.mxu0 0.0
    %60 = vmatpush1.msra.mxu0 0.0
    %61 = vmatprep.subr.mxu0 0.0
    %62 = vmatpush1.msra.mxu0 0.0
    %63 = vmatprep.subr.mxu0 0.0
    %64 = vmatpush1.msra.mxu0 0.0
    %65 = vmatprep.subr.mxu0 0.0
    %66 = vmatpush1.msra.mxu0 0.0
    %67 = vmatprep.subr.mxu0 0.0
    %68 = vmatpush1.msra.mxu0 0.0
    %69 = vmatprep.subr.mxu0 0.0
    %70 = vmatpush1.msra.mxu0 %v25
    %71 = vmatprep.subr.mxu0 0.0
    %72 = vmatpush1.msra.mxu0 %v24
    %73 = vmatprep.subr.mxu0 0.0
    %74 = vmatpush1.msra.mxu0 %v23
    %75 = vmatprep.subr.mxu0 0.0
    %76 = vmatpush1.msra.mxu0 %v22
    %77 = vmatprep.subr.mxu0 0.0
    %78 = vmatpush2.msra.mxu0 0.0
    %79 = vmatprep.subr.mxu0 0.0
    %80 = vmatpush2.msra.mxu0 0.0
    %81 = vmatprep.subr.mxu0 0.0
    %82 = vmatpush2.msra.mxu0 0.0
    %83 = vmatprep.subr.mxu0 0.0
    %84 = vmatpush2.msra.mxu0 0.0
    %85 = vmatprep.subr.mxu0 0.0
    %86 = vmatpush2.msra.mxu0 0.0
    %87 = vmatprep.subr.mxu0 0.0
    %88 = vmatpush2.msra.mxu0 0.0
    %89 = vmatprep.subr.mxu0 0.0
    %90 = vmatpush2.msra.mxu0 0.0
    %91 = vmatprep.subr.mxu0 0.0
    %92 = vmatpush2.msra.mxu0 0.0
    %93 = vmatprep.subr.mxu0 0.0
    %94 = vmatpush2.msra.mxu0 0.0
    %95 = vmatprep.subr.mxu0 0.0
    %96 = vmatpush2.msra.mxu0 0.0
    %97 = vmatprep.subr.mxu0 0.0
    %98 = vmatpush2.msra.mxu0 0.0
    %99 = vmatprep.subr.mxu0 0.0
    %100 = vmatpush2.msra.mxu0 0.0
    %101 = vmatprep.subr.mxu0 0.0
    %102 = vmatpush2.msra.mxu0 0.0
    %103 = vmatprep.subr.mxu0 0.0
    %104 = vmatpush2.msra.mxu0 0.0
    %105 = vmatprep.subr.mxu0 0.0
    %106 = vmatpush2.msra.mxu0 0.0
    %107 = vmatprep.subr.mxu0 0.0
    %108 = vmatpush2.msra.mxu0 0.0
    %109 = vmatprep.mubr.f32.mxu0 0.0
    %110 = vmatmul.mubr.f32.gmra.mxu0 %v34
    %v111 = vpop.f32.mrf.mxu0
    %v112 = vadd.f32 0.0, %v111
    %v113 = vpop.f32.mrf.mxu0
    %114 = vmatprep.mubr.f32.mxu0 0.0
    %115 = vmatmul.mubr.f32.gmra.mxu0 %v37
    %v116 = vpop.f32.mrf.mxu0
    %v117 = vadd.f32 0.0, %v116
    %v118 = vpop.f32.mrf.mxu0
    %119 = vmatprep.mubr.f32.mxu0 0.0
    %120 = vmatmul.mubr.f32.gmra.mxu0 %v40
    %v121 = vpop.f32.mrf.mxu0
    %v122 = vadd.f32 0.0, %v121
    %v123 = vpop.f32.mrf.mxu0
    %124 = vmatprep.mubr.f32.mxu0 0.0
    %125 = vmatmul.mubr.f32.gmra.mxu0 %v43
    %v126 = vpop.f32.mrf.mxu0
    %v127 = vadd.f32 0.0, %v126
    %v128 = vpop.f32.mrf.mxu0
    %129 = vdwg.mxu0
    %v130 = vld [vmem:[%s1] sm:$0x3]
    %v131 = vlaneseq
    %v132 = vshrl.u32 %v131, 7
    %v133 = vsub.s32 0, %v132
    %v134 = vrot.slane %v30, %v133
    %v136 = vsel %vm32, %v130, 0
    %138 = vmatprep.subr.mxu0 0.0
    %139 = vmatpush1.msra.mxu0 0.0
    %140 = vmatprep.subr.mxu0 0.0
    %141 = vmatpush1.msra.mxu0 0.0
    %142 = vmatprep.subr.mxu0 0.0
    %143 = vmatpush1.msra.mxu0 0.0
    %144 = vmatprep.subr.mxu0 0.0
    %145 = vmatpush1.msra.mxu0 0.0
    %146 = vmatprep.subr.mxu0 0.0
    %147 = vmatpush1.msra.mxu0 0.0
    %148 = vmatprep.subr.mxu0 0.0
    %149 = vmatpush1.msra.mxu0 0.0
    %150 = vmatprep.subr.mxu0 0.0
    %151 = vmatpush1.msra.mxu0 0.0
    %152 = vmatprep.subr.mxu0 0.0
    %153 = vmatpush1.msra.mxu0 0.0
    %154 = vmatprep.subr.mxu0 0.0
    %155 = vmatpush1.msra.mxu0 0.0
    %156 = vmatprep.subr.mxu0 0.0
    %157 = vmatpush1.msra.mxu0 0.0
    %158 = vmatprep.subr.mxu0 0.0
    %159 = vmatpush1.msra.mxu0 0.0
    %160 = vmatprep.subr.mxu0 0.0
    %161 = vmatpush1.msra.mxu0 0.0
    %162 = vmatprep.subr.mxu0 0.0
    %163 = vmatpush1.msra.mxu0 %v29
    %164 = vmatprep.subr.mxu0 0.0
    %165 = vmatpush1.msra.mxu0 %v28
    %166 = vmatprep.subr.mxu0 0.0
    %167 = vmatpush1.msra.mxu0 %v27
    %168 = vmatprep.subr.mxu0 0.0
    %169 = vmatpush1.msra.mxu0 %v26
    %170 = vmatprep.subr.mxu0 0.0
    %171 = vmatpush2.msra.mxu0 0.0
    %172 = vmatprep.subr.mxu0 0.0
    %173 = vmatpush2.msra.mxu0 0.0
    %174 = vmatprep.subr.mxu0 0.0
    %175 = vmatpush2.msra.mxu0 0.0
    %176 = vmatprep.subr.mxu0 0.0
    %177 = vmatpush2.msra.mxu0 0.0
    %178 = vmatprep.subr.mxu0 0.0
    %179 = vmatpush2.msra.mxu0 0.0
    %180 = vmatprep.subr.mxu0 0.0
    %181 = vmatpush2.msra.mxu0 0.0
    %182 = vmatprep.subr.mxu0 0.0
    %183 = vmatpush2.msra.mxu0 0.0
    %184 = vmatprep.subr.mxu0 0.0
    %185 = vmatpush2.msra.mxu0 0.0
    %186 = vmatprep.subr.mxu0 0.0
    %187 = vmatpush2.msra.mxu0 0.0
    %188 = vmatprep.subr.mxu0 0.0
    %189 = vmatpush2.msra.mxu0 0.0
    %190 = vmatprep.subr.mxu0 0.0
    %191 = vmatpush2.msra.mxu0 0.0
    %192 = vmatprep.subr.mxu0 0.0
    %193 = vmatpush2.msra.mxu0 0.0
    %194 = vmatprep.subr.mxu0 0.0
    %195 = vmatpush2.msra.mxu0 0.0
    %196 = vmatprep.subr.mxu0 0.0
    %197 = vmatpush2.msra.mxu0 0.0
    %198 = vmatprep.subr.mxu0 0.0
    %199 = vmatpush2.msra.mxu0 0.0
    %200 = vmatprep.subr.mxu0 0.0
    %201 = vmatpush2.msra.mxu0 0.0
    %202 = vmatprep.mubr.f32.mxu0 0.0
    %203 = vmatmul.mubr.f32.gmra.mxu0 %v136
    %v204 = vpop.f32.mrf.mxu0
    %v205 = vadd.f32 %v134, %v204
    %v206 = vpop.f32.mrf.mxu0
    %207 = vdwg.mxu0
    %v210 = vunpack.c.l.s4 1966171168
    %v211 = vunpack.c.0.s8 %v210
    %v212 = vlaneseq
    %v213 = vshrl.u32 %v212, 7
    %v214 = vsub.s32 %v211, %v213
    %v215 = vrot.slane %v205, %v214
    %v216 = vcombine.high %v215, %v215
    %v218 = vunpack.c.l.s4 1966171168
    %v219 = vunpack.c.0.s8 %v218
    %v220 = vlaneseq
    %v221 = vshrl.u32 %v220, 7
    %v222 = vsub.s32 %v219, %v221
    %v223 = vrot.slane %v215, %v222
    %v225 = vunpack.c.l.s4 1966171168
    %v226 = vunpack.c.0.s8 %v225
    %v227 = vlaneseq
    %v228 = vshrl.u32 %v227, 7
    %v229 = vsub.s32 %v226, %v228
    %v230 = vrot.slane %v216, %v229
    %v231 = vlaneseq
    %v232 = vshrl.u32 %v231, 7
    %v233 = vsub.s32 0, %v232
    %v234 = vrot.slane %v223, %v233
    %v235 = vlaneseq
    %v236 = vshrl.u32 %v235, 7
    %v237 = vsub.s32 0, %v236
    %v238 = vrot.slane %v230, %v237
    %v241 = vadd.f32 %v112, %v234
    %v242 = vadd.f32 %v117, %v234
    %v243 = vadd.f32 %v122, %v238
    %v244 = vadd.f32 %v127, %v238
    %v245 = vmax.f32 %v241, 0.0
    %v246 = vmax.f32 %v242, 0.0
    %v247 = vmax.f32 %v243, 0.0
    %v248 = vmax.f32 %v244, 0.0
    %v249 = vlaneseq
    %v250 = vshrl.u32 %v249, 7
    %v251 = vsub.s32 0, %v250
    %v252 = vrot.slane %v31, %v251
    %v253 = vmul.f32 %v245, %v252
    %v254 = vmul.f32 %v246, %v252
    %v255 = vmul.f32 %v247, %v252
    %v256 = vmul.f32 %v248, %v252
    %v257 = vsel %vm32, %v253, 0.0
    %258 = vadd.xlane.f32.xlu0 %v257
    %v259 = vpop.xlane.xlu0 %258
    %v260 = vsel %vm32, %v254, 0.0
    %261 = vadd.xlane.f32.xlu0 %v260
    %v262 = vpop.xlane.xlu0 %261
    %v263 = vsel %vm32, %v255, 0.0
    %264 = vadd.xlane.f32.xlu0 %v263
    %v265 = vpop.xlane.xlu0 %264
    %v266 = vsel %vm32, %v256, 0.0
    %267 = vadd.xlane.f32.xlu0 %v266
    %v268 = vpop.xlane.xlu0 %267
    %v273 = vlaneseq
    %v274 = vand.u32 %v273, 127
    %v275 = vlaneseq
    %v276 = vshrl.u32 %v275, 7
    %v277 = vsub.s32 %v274, %v276
    %v278 = vrot.slane %v259, %v277
    %v279 = vadd.s32 %v274, 4294967288
    %v280 = vlaneseq
    %v281 = vshrl.u32 %v280, 7
    %v282 = vsub.s32 %v279, %v281
    %v283 = vrot.slane %v262, %v282
    %vm284 = vcmask 130112
    %v285 = vsel %vm284, %v283, %v278
    %v286 = vlaneseq
    %v287 = vshrl.u32 %v286, 7
    %v288 = vsub.s32 %v274, %v287
    %v289 = vrot.slane %v265, %v288
    %v290 = vlaneseq
    %v291 = vshrl.u32 %v290, 7
    %v292 = vsub.s32 %v279, %v291
    %v293 = vrot.slane %v268, %v292
    %v294 = vsel %vm284, %v293, %v289
    %vm295 = vcmask 1041409
    %v296 = vsel %vm295, %v294, %v285
    %vm298 = vcmask 123904
    %v299 = vsel %vm298, %v296, -inf
    %300 = vmax.xlane.f32.xlu0 %v299
    %v301 = vpop.xlane.xlu0 %300
    %v303 = vlaneseq
    %v304 = vshrl.u32 %v303, 7
    %v305 = vsub.s32 0, %v304
    %v306 = vrot.slane %v301, %v305
    %v307 = vlaneseq
    %v308 = vshrl.u32 %v307, 7
    %v309 = vsub.s32 1, %v308
    %v310 = vrot.slane %v301, %v309
    %v313 = vsub.f32 %v259, %v306
    %v314 = vsub.f32 %v262, %v306
    %v315 = vsub.f32 %v265, %v310
    %v316 = vsub.f32 %v268, %v310
    %v317 = vmul.f32 %v313, 1.442695
    %v318 = vpow.pop %v317
    %v319 = vmul.f32 %v314, 1.442695
    %v320 = vpow.pop %v319
    %v321 = vmul.f32 %v315, 1.442695
    %v322 = vpow.pop %v321
    %v323 = vmul.f32 %v316, 1.442695
    %v324 = vpow.pop %v323
    %329 = vset.pattern.permute.xlu0 0
    %330 = vperm.xlu0 %329, %v318
    %v331 = vpop.permute.xlu0 %330
    %332 = vset.pattern.permute.xlu0 0
    %333 = vperm.xlu0 %332, %v320
    %v334 = vpop.permute.xlu0 %333
    %335 = vset.pattern.permute.xlu0 0
    %336 = vperm.xlu0 %335, %v322
    %v337 = vpop.permute.xlu0 %336
    %338 = vset.pattern.permute.xlu0 0
    %339 = vperm.xlu0 %338, %v324
    %v340 = vpop.permute.xlu0 %339
    %v341 = vlaneseq
    %v342 = vshrl.u32 %v341, 7
    %v343 = vsub.s32 %v274, %v342
    %v344 = vrot.slane %v331, %v343
    %v345 = vlaneseq
    %v346 = vshrl.u32 %v345, 7
    %v347 = vsub.s32 %v279, %v346
    %v348 = vrot.slane %v334, %v347
    %v349 = vsel %vm284, %v348, %v344
    %v350 = vlaneseq
    %v351 = vshrl.u32 %v350, 7
    %v352 = vsub.s32 %v274, %v351
    %v353 = vrot.slane %v337, %v352
    %v354 = vlaneseq
    %v355 = vshrl.u32 %v354, 7
    %v356 = vsub.s32 %v279, %v355
    %v357 = vrot.slane %v340, %v356
    %v358 = vsel %vm284, %v357, %v353
    %v359 = vsel %vm295, %v358, %v349
    %v361 = vsel %vm298, %v359, 0.0
    %362 = vadd.xlane.f32.xlu0 %v361
    %v363 = vpop.xlane.xlu0 %362
    %v364 = vrcp.pop %v363
    %v366 = vlaneseq
    %v367 = vshrl.u32 %v366, 7
    %v368 = vsub.s32 0, %v367
    %v369 = vrot.slane %v364, %v368
    %v370 = vlaneseq
    %v371 = vshrl.u32 %v370, 7
    %v372 = vsub.s32 1, %v371
    %v373 = vrot.slane %v364, %v372
    %v376 = vmul.f32 %v318, %v369
    %v377 = vmul.f32 %v320, %v369
    %v378 = vmul.f32 %v322, %v373
    %v379 = vmul.f32 %v324, %v373
    %384 = vset.pattern.permute.xlu0 0
    %385 = vperm.xlu0 %384, %v376
    %v386 = vpop.permute.xlu0 %385
    %387 = vset.pattern.permute.xlu0 0
    %388 = vperm.xlu0 %387, %v377
    %v389 = vpop.permute.xlu0 %388
    %390 = vset.pattern.permute.xlu0 0
    %391 = vperm.xlu0 %390, %v378
    %v392 = vpop.permute.xlu0 %391
    %393 = vset.pattern.permute.xlu0 0
    %394 = vperm.xlu0 %393, %v379
    %v395 = vpop.permute.xlu0 %394
    %v396 = vlaneseq
    %v397 = vshrl.u32 %v396, 7
    %v398 = vsub.s32 %v274, %v397
    %v399 = vrot.slane %v386, %v398
    %v400 = vlaneseq
    %v401 = vshrl.u32 %v400, 7
    %v402 = vsub.s32 %v279, %v401
    %v403 = vrot.slane %v389, %v402
    %v404 = vsel %vm284, %v403, %v399
    %v405 = vlaneseq
    %v406 = vshrl.u32 %v405, 7
    %v407 = vsub.s32 %v274, %v406
    %v408 = vrot.slane %v392, %v407
    %v409 = vlaneseq
    %v410 = vshrl.u32 %v409, 7
    %v411 = vsub.s32 %v279, %v410
    %v412 = vrot.slane %v395, %v411
    %v413 = vsel %vm284, %v412, %v408
    %v414 = vsel %vm295, %v413, %v404
    %416 = vst.msk [vmem:[#allocation4] sm:$0x3] %vm298, %v414
    %v421 = vmul.f32 %v386, %v18
    %v422 = vmul.f32 %v389, %v19
    %v423 = vmul.f32 %v392, %v20
    %v424 = vmul.f32 %v395, %v21
    %v425 = vsel %vm32, %v421, 0.0
    %v426 = vsel %vm32, %v422, 0.0
    %v427 = vadd.f32 %v425, %v426
    %v428 = vrot.slane %v427, 4
    %v429 = vadd.f32 %v427, %v428
    %v430 = vrot.slane %v429, 2
    %v431 = vadd.f32 %v429, %v430
    %v432 = vrot.slane %v431, 1
    %v433 = vadd.f32 %v431, %v432
    %v434 = vsel %vm32, %v423, 0.0
    %v435 = vsel %vm32, %v424, 0.0
    %v436 = vadd.f32 %v434, %v435
    %v437 = vrot.slane %v436, 4
    %v438 = vadd.f32 %v436, %v437
    %v439 = vrot.slane %v438, 2
    %v440 = vadd.f32 %v438, %v439
    %v441 = vrot.slane %v440, 1
    %v442 = vadd.f32 %v440, %v441
    %v445 = vsel %vm295, %v442, %v433
    %vm447 = vcmask 254976
    %448 = vst.msk [vmem:[#allocation2] sm:$0x3] %vm447, %v445
    // Predicated region
    $region14: #{tpu_custom_call.1} parent=1 // pred_check
      _
    $region15: #{tpu_custom_call.1} parent=1 // pred_check_branch
      %450 = sbr.rel (0) target = $region17
    $region16: #{tpu_custom_call.1} parent=1 // pred_region
      %s452 = ssub.s32 32, 32
      %453 = vsyncadd [#allocation3], %s452
      %s455 = sshll.u32 [#allocation2], 4
      %s456 = int_to_ptr.vmem [resolvable:$true] %s455
      %458 = dma.vmem_to_hbm [thread:$0]  %s456, 32, %s3, [#allocation3]
    $region17: #{tpu_custom_call.1} parent=1 // pred_fallthru
      _
    // Predicated region
    $region18: #{tpu_custom_call.1} parent=1 // pred_check
      _
    $region19: #{tpu_custom_call.1} parent=1 // pred_check_branch
      %460 = sbr.rel (0) target = $region21
    $region20: #{tpu_custom_call.1} parent=1 // pred_region
      %s462 = ssub.s32 32, 32
      %463 = vsyncadd [#allocation5], %s462
      %s465 = sshll.u32 [#allocation4], 4
      %s466 = int_to_ptr.vmem [resolvable:$true] %s465
      %468 = dma.vmem_to_hbm [thread:$0]  %s466, 32, %s4, [#allocation5]
    $region21: #{tpu_custom_call.1} parent=1 // pred_fallthru
      _
    // Predicated region
    $region22: #{tpu_custom_call.1} parent=1 // pred_check
      _
    $region23: #{tpu_custom_call.1} parent=1 // pred_check_branch
      %470 = sbr.rel (0) target = $region25
    $region24: #{tpu_custom_call.1} parent=1 // pred_region
      %471 = dma.done [#allocation3], 32
    $region25: #{tpu_custom_call.1} parent=1 // pred_fallthru
      _
    // Predicated region
    $region26: #{tpu_custom_call.1} parent=1 // pred_check
      _
    $region27: #{tpu_custom_call.1} parent=1 // pred_check_branch
      %473 = sbr.rel (0) target = $region29
    $region28: #{tpu_custom_call.1} parent=1 // pred_region
      %474 = dma.done [#allocation5], 32
    $region29: #{tpu_custom_call.1} parent=1 // pred_fallthru
      _
    %475 = vsyncpa [#allocation3], 1
    %476 = vsyncpa [#allocation5], 1

</llo_original>
